<compile_context>
chip_gen: v7x
topology: tpu7x:2x2x1
jax: 0.10.0
libtpu: 0.0.40
codegen_flags: <defaults>
</compile_context>

<pallas_src>
import functools

import jax
import jax.numpy as jnp
from jax.experimental import pallas as pl
from jax.experimental.pallas import tpu as pltpu

_LANE = 128
_SMALL_BYPASS_BYTES = 128 * 1024      # below this, plain jnp (fuses with neighbours)
_MIN_GRID_STEPS = 4                   # keep >= 4 grid steps so v7x megacore can split
_MIN_SPLIT_BYTES = 512 * 1024         # only force grid splitting above this size
_RAGGED_TILE_ELEMS = 64 * 1024        # flat 1-D fallback tile (multiple of 32*128)


def _per_generation_params():
    """(vmem_limit_bytes, target_tile_bytes) chosen from physical VMEM size."""
    vmem_bytes = None
    try:
        info = pltpu.get_tpu_info()
        for attr in ("vmem_capacity_bytes", "vmem_bytes", "vmem_size_bytes"):
            val = getattr(info, attr, None)
            if val:
                vmem_bytes = int(val)
                break
    except Exception:
        pass
    if vmem_bytes is None:
        vmem_bytes = 64 * 1024 * 1024          # be conservative (v7x physical size)
    if vmem_bytes >= 128 * 1024 * 1024:        # v5e / v6e: 128 MiB physical VMEM
        return 64 * 1024 * 1024, 8 * 1024 * 1024
    # v7x: 64 MiB physical, keep the default 32 MiB scoped limit.
    return 32 * 1024 * 1024, 4 * 1024 * 1024


_VMEM_LIMIT_BYTES, _TARGET_TILE_BYTES = _per_generation_params()


def _binary_kernel(a_ref, b_ref, o_ref, *, op: str):
    a = a_ref[...]
    b = b_ref[...]
    if op == "add":
        r = a + b
    elif op == "subtract":
        r = a - b
    elif op == "multiply":
        r = a * b
    elif op == "divide":
        r = a / b              # true division (ints promote to float, like torch.div)
    else:
        raise ValueError(f"unsupported op: {op}")
    o_ref[...] = r.astype(o_ref.dtype)


def _sublane_min(dtype):
    # Native packed sublane tile: 8 rows for 4-byte, 16 for 2-byte, 32 for 1-byte dtypes.
    return max(8, 32 // jnp.dtype(dtype).itemsize)


def _pick_lanes(n_elems):
    # Widest lane-dense layout that divides the element count (metadata-only reshape).
    for lanes in (1024, 512, 256, 128):
        if n_elems % lanes == 0:
            return lanes
    return None


def _round_up(x, m):
    return ((x + m - 1) // m) * m


def _jnp_binary(a, b, op):
    if op == "add":
        return a + b
    if op == "subtract":
        return a - b
    if op == "multiply":
        return a * b
    if op == "divide":
        return a / b
    raise ValueError(f"unsupported op: {op}")


def _pallas_elementwise(a, b, op, out_dtype, block_shape):
    """Runs the elementwise kernel over `a`/`b` (1-D or 2-D, same shape)."""
    n = a.size
    in_bytes = jnp.dtype(a.dtype).itemsize
    out_bytes = jnp.dtype(out_dtype).itemsize
    grid = (pl.cdiv(a.shape[0], block_shape[0]),)
    if a.ndim == 2:
        index_map = lambda i: (i, 0)
    else:
        index_map = lambda i: (i,)
    spec = pl.BlockSpec(block_shape, index_map)
    return pl.pallas_call(
        functools.partial(_binary_kernel, op=op),
        out_shape=jax.ShapeDtypeStruct(a.shape, out_dtype),
        grid=grid,
        in_specs=[spec, spec],
        out_specs=spec,
        compiler_params=pltpu.CompilerParams(
            dimension_semantics=("parallel",),
            vmem_limit_bytes=_VMEM_LIMIT_BYTES,
        ),
        cost_estimate=pl.CostEstimate(
            flops=n,
            transcendentals=0,
            bytes_accessed=2 * n * in_bytes + n * out_bytes,
        ),
    )(a, b)


@functools.partial(jax.jit, static_argnames=("op", "min_pallas_bytes"))
def model_forward(input1, input2, op: str = "add",
                  min_pallas_bytes: int = _SMALL_BYPASS_BYTES):
    """Equivalent of Model(op).forward(input1, input2) for elementwise binary ops."""
    # Bypass: broadcasting / mixed-dtype / empty / tiny tensors go through plain
    # jnp so XLA can fuse them with neighbouring graph ops; a standalone Pallas
    # launch would only add fixed overhead there.
    if (input1.shape != input2.shape
            or input1.dtype != input2.dtype
            or input1.size == 0
            or input1.size * jnp.dtype(input1.dtype).itemsize < min_pallas_bytes):
        return _jnp_binary(input1, input2, op)

    orig_shape = input1.shape
    in_dtype = input1.dtype
    n_elems = input1.size
    itemsize = jnp.dtype(in_dtype).itemsize

    # torch.div on integer tensors does true division and returns float.
    if op == "divide" and not jnp.issubdtype(in_dtype, jnp.floating):
        out_dtype = jnp.float32
    else:
        out_dtype = jnp.dtype(in_dtype)

    # Size the tiles against the largest element width touched (guards the
    # int-in / float-out divide case).
    tile_itemsize = max(itemsize, jnp.dtype(out_dtype).itemsize)
    total_bytes = n_elems * itemsize
    smin = _sublane_min(in_dtype)
    lanes = _pick_lanes(n_elems)

    if lanes is not None:
        # Fast path: metadata-only reshape into a lane-dense 2-D slab.
        rows = n_elems // lanes
        a2d = input1.reshape(rows, lanes)
        b2d = input2.reshape(rows, lanes)

        target_rows = max(smin,
                          (_TARGET_TILE_BYTES // (lanes * tile_itemsize)) // smin * smin)
        tile_rows = min(rows, target_rows)
        if total_bytes >= _MIN_SPLIT_BYTES:
            # Keep >= _MIN_GRID_STEPS grid steps so v7x can shard across both TCs.
            split_rows = max(smin, _round_up(pl.cdiv(rows, _MIN_GRID_STEPS), smin))
            tile_rows = min(tile_rows, split_rows)
        # tile_rows is either == rows (full dim, always legal) or a multiple of
        # smin; a partial trailing row-block is masked by Pallas.  The masked
        # region may compute on stale VMEM contents -- safe on TPU (no FP traps,
        # masked store never lands); do NOT "fix" it by padding.
        out2d = _pallas_elementwise(a2d, b2d, op, out_dtype, (tile_rows, lanes))
        return out2d.reshape(orig_shape)

    # Ragged fallback: run over the flat 1-D array.  The block is a multiple of
    # smin*128 lanes, so Pallas masks the partial trailing block -- no jnp.pad
    # of the inputs and no output slice, i.e. no extra HBM round trips.  For
    # divide, the masked tail can produce NaN/inf from stale VMEM data; TPU has
    # no FP traps and the masked store never lands, so it is safe.
    a1d = input1.reshape(-1)
    b1d = input2.reshape(-1)
    align = smin * _LANE
    tile = min(_RAGGED_TILE_ELEMS, _round_up(n_elems, align))
    if total_bytes >= _MIN_SPLIT_BYTES:
        tile = min(tile, _round_up(pl.cdiv(n_elems, _MIN_GRID_STEPS), align))
    out1d = _pallas_elementwise(a1d, b1d, op, out_dtype, (tile,))
    return out1d.reshape(orig_shape)


if __name__ == "__main__":
    key = jax.random.PRNGKey(0)
    k1, k2, k3, k4 = jax.random.split(key, 4)

    # Small NCHW inputs matching the PyTorch test convention: batch=2, ch=4, 16x16.
    x1 = jax.random.normal(k1, (2, 4, 16, 16), dtype=jnp.float32)
    x2 = jax.random.normal(k2, (2, 4, 16, 16), dtype=jnp.float32)

    # Force the Pallas kernel for the small reference shapes (min_pallas_bytes=0).
    out = jax.block_until_ready(model_forward(x1, x2, op="add", min_pallas_bytes=0))
    assert out.shape == x1.shape and out.dtype == x1.dtype
    assert jnp.allclose(out, x1 + x2, atol=1e-6, rtol=1e-6)

    assert jnp.allclose(
        jax.block_until_ready(model_forward(x1, x2, op="subtract", min_pallas_bytes=0)),
        x1 - x2, atol=1e-6, rtol=1e-6)
    assert jnp.allclose(
        jax.block_until_ready(model_forward(x1, x2, op="multiply", min_pallas_bytes=0)),
        x1 * x2, atol=1e-6, rtol=1e-6)
    x2_safe = jnp.abs(x2) + 0.5
    assert jnp.allclose(
        jax.block_until_ready(model_forward(x1, x2_safe, op="divide", min_pallas_bytes=0)),
        x1 / x2_safe, atol=1e-6, rtol=1e-6)

    # Default small-tensor bypass (plain jnp, fusable) must agree too.
    assert jnp.allclose(jax.block_until_ready(model_forward(x1, x2, op="add")),
                        x1 + x2, atol=1e-6, rtol=1e-6)

    # bf16 path (dtype-aware sublane tiling).
    b1 = x1.astype(jnp.bfloat16)
    b2 = x2.astype(jnp.bfloat16)
    out_bf16 = jax.block_until_ready(model_forward(b1, b2, op="add", min_pallas_bytes=0))
    assert out_bf16.dtype == jnp.bfloat16
    assert jnp.allclose(out_bf16.astype(jnp.float32), (b1 + b2).astype(jnp.float32),
                        atol=1e-2, rtol=1e-2)

    # Larger input exercising the multi-block, megacore-splittable pipelined path.
    y1 = jax.random.normal(k3, (8, 32, 64, 64), dtype=jnp.float32)
    y2 = jax.random.normal(k4, (8, 32, 64, 64), dtype=jnp.float32)
    out_big = jax.block_until_ready(model_forward(y1, y2, op="add"))
    assert jnp.allclose(out_big, y1 + y2, atol=1e-6, rtol=1e-6)

    # Ragged size (not a multiple of 128): flat 1-D path, single masked block.
    r1 = jax.random.normal(k1, (3, 5, 7), dtype=jnp.float32)
    r2 = jax.random.normal(k2, (3, 5, 7), dtype=jnp.float32)
    out_r = jax.block_until_ready(model_forward(r1, r2, op="add", min_pallas_bytes=0))
    assert jnp.allclose(out_r, r1 + r2, atol=1e-6, rtol=1e-6)

    # Bigger ragged size: flat 1-D path with a multi-step grid and a masked
    # partial trailing block (no pad / slice HBM round trips).
    q1 = jax.random.normal(k3, (997, 131), dtype=jnp.float32)
    q2 = jax.random.normal(k4, (997, 131), dtype=jnp.float32)
    out_q = jax.block_until_ready(model_forward(q1, q2, op="multiply"))
    assert jnp.allclose(out_q, q1 * q2, atol=1e-6, rtol=1e-6)

    # TODO(synk): broadcasting / mixed-dtype operands fall back to plain jnp
    # (torch semantics covered, but not by the Pallas kernel itself).

    print("KERNEL_OK")
</pallas_src>

<mosaic_0001>
module attributes {stable_mosaic.version = 11 : i64} {
  func.func @_binary_kernel(%arg0: i32, %arg1: memref<2x1024xf32, #tpu.memory_space<vmem>>, %arg2: memref<2x1024xf32, #tpu.memory_space<vmem>>, %arg3: memref<2x1024xf32, #tpu.memory_space<vmem>>) attributes {dimension_semantics = [#tpu.dimension_semantics<parallel>], iteration_bounds = array<i64: 1>, scalar_prefetch = 0 : i64, scratch_operands = 0 : i64, tpu.core_type = #tpu.core_type<tc>, window_params = [{transform_indices = @transform_0, window_bounds = array<i64: 2, 1024>}, {transform_indices = @transform_1, window_bounds = array<i64: 2, 1024>}, {transform_indices = @transform_2, window_bounds = array<i64: 2, 1024>}]} {
    %c0 = arith.constant 0 : index
    %c0_0 = arith.constant 0 : index
    %0 = vector.load %arg1[%c0, %c0_0] : memref<2x1024xf32, #tpu.memory_space<vmem>>, vector<2x1024xf32>
    %c0_1 = arith.constant 0 : index
    %c0_2 = arith.constant 0 : index
    %1 = vector.load %arg2[%c0_1, %c0_2] : memref<2x1024xf32, #tpu.memory_space<vmem>>, vector<2x1024xf32>
    %2 = arith.addf %0, %1 : vector<2x1024xf32>
    %c0_3 = arith.constant 0 : index
    %c0_4 = arith.constant 0 : index
    %3 = vector.load %arg3[%c0_3, %c0_4] : memref<2x1024xf32, #tpu.memory_space<vmem>>, vector<2x1024xf32>
    tpu.vector_store %arg3[%c0_3, %c0_4], %2 {strides = array<i32>} : memref<2x1024xf32, #tpu.memory_space<vmem>>, vector<2x1024xf32>,
    return
  }
  func.func @transform_0(%arg0: i32) -> (i32, i32) {
    %c0_i32 = arith.constant 0 : i32
    %c0_i32_0 = arith.constant 0 : i32
    return %arg0, %c0_i32 : i32, i32
  }
  func.func @transform_1(%arg0: i32) -> (i32, i32) {
    %c0_i32 = arith.constant 0 : i32
    %c0_i32_0 = arith.constant 0 : i32
    return %arg0, %c0_i32 : i32, i32
  }
  func.func @transform_2(%arg0: i32) -> (i32, i32) {
    %c0_i32 = arith.constant 0 : i32
    %c0_i32_0 = arith.constant 0 : i32
    return %arg0, %c0_i32 : i32, i32
  }
}

</mosaic_0001>

<llo_original>
// kernel: model_forward.1
$region0: #{model_forward.1}
  #allocation0 [shape = 'u32[]', space=smem, size = 0x4, offset = 0x4, fixed_abs, tag = 'smem constant byte address 0x4 - core index']
  #allocation1 [shape = 'u32[144,128]{1,0:T(1,128)}', space=vmem, size = 0x12000, scoped, tag = 'internal scratch']
  %s0 = inlined_call_operand.vmem [shape: f32[2,1024], index: 0, kind: input, shape index: {}]
  %s1 = inlined_call_operand.vmem [shape: f32[2,1024], index: 1, kind: input, shape index: {}]
  %s2 = inlined_call_operand.vmem [shape: f32[2,1024], index: 2, kind: output, shape index: {}]
  %s3 = sld [smem:[#allocation0]]
  $region18: #{model_forward.1} parent=0
    _
  %s5 = ssub.s32 1, %s3
  %s6 = scalar_select 0, %s5, %s3
  // Predicated region
  $region2: #{model_forward.1} parent=0 // pred_check
    _
  $region3: #{model_forward.1} parent=0 // pred_check_branch
    %8 = sbr.rel (0) target = $region5
  $region4: #{model_forward.1} parent=0 // pred_region
    _
  $region5: #{model_forward.1} parent=0 // pred_fallthru
    _
  // Predicated region
  $region6: #{model_forward.1} parent=0 // pred_check
    _
  $region7: #{model_forward.1} parent=0 // pred_check_branch
    %10 = sbr.rel (0) target = $region9
  $region8: #{model_forward.1} parent=0 // pred_region
    _
  $region9: #{model_forward.1} parent=0 // pred_fallthru
    _
  %v11 = vld [vmem:[%s0] sm:$0xff]
  %v12 = vld [vmem:[%s0 + $0x8] sm:$0xff]
  %v13 = vld [vmem:[%s1] sm:$0xff]
  %v14 = vld [vmem:[%s1 + $0x8] sm:$0xff]
  %v15 = vadd.f32 %v11, %v13
  %v16 = vadd.f32 %v12, %v14
  %17 = vst [vmem:[%s2] sm:$0xff] %v15
  %18 = vst [vmem:[%s2 + $0x8] sm:$0xff] %v16
  // Predicated region
  $region10: #{model_forward.1} parent=0 // pred_check
    _
  $region11: #{model_forward.1} parent=0 // pred_check_branch
    %20 = sbr.rel (0) target = $region13
  $region12: #{model_forward.1} parent=0 // pred_region
    _
  $region13: #{model_forward.1} parent=0 // pred_fallthru
    _
  // Predicated region
  $region14: #{model_forward.1} parent=0 // pred_check
    _
  $region15: #{model_forward.1} parent=0 // pred_check_branch
    %22 = sbr.rel (0) target = $region17
  $region16: #{model_forward.1} parent=0 // pred_region
    _
  $region17: #{model_forward.1} parent=0 // pred_fallthru
    _

</llo_original>
